<compile_context>
chip_gen: v7x
topology: tpu7x:2x2x1
jax: 0.10.0
libtpu: 0.0.40
codegen_flags: <defaults>
</compile_context>

<pallas_src>
import jax
import jax.numpy as jnp
from jax.experimental import pallas as pl
from jax.experimental.pallas import tpu as pltpu


def _logreg_kernel(x_ref, w_ref, b_ref, o_ref):
    # x_ref: (TILE_N, F) VMEM (streamed), w_ref: (F, 1) VMEM (grid-resident),
    # b_ref: (1, 1) SMEM scalar, o_ref: (TILE_N, 1) VMEM.
    logits = jnp.dot(x_ref[...], w_ref[...],
                     preferred_element_type=jnp.float32) + b_ref[0, 0]
    # Exact sigmoid; exp over/underflow for extreme logits still yields 0/1.
    o_ref[...] = (1.0 / (1.0 + jnp.exp(-logits))).astype(o_ref.dtype)


def _round_up(v, m):
    return (v + m - 1) // m * m


def _vmem_capacity_bytes():
    # Trace-time hardware query; fall back to the smallest per-core VMEM
    # across supported generations (v7x: 64 MiB per TC) if unavailable.
    try:
        return int(pltpu.get_tpu_info().vmem_capacity_bytes)
    except Exception:
        return 64 * 1024 * 1024


def logistic_regression_forward(x, weight, bias, *, tile_n=None):
    """x: [N, F], weight: [1, F] (nn.Linear layout), bias: [1] -> [N, 1].

    `tile_n` optionally caps the batch tile (rows); by default the tile is
    derived from a lane-padding-aware, generation-aware VMEM budget so each
    grid step streams multi-MiB of x.
    """
    n, f = x.shape
    dt = x.dtype
    x_itemsize = jnp.dtype(dt).itemsize
    out_itemsize = x_itemsize

    # Generation-aware VMEM limit: 48 MiB on v7x (64 MiB/TC physical),
    # 64 MiB on v5e/v6e (128 MiB physical).
    vmem_cap = _vmem_capacity_bytes()
    vmem_limit = min(64 * 1024 * 1024, (vmem_cap * 3) // 4)

    # Lane-padding-aware per-row footprints. A (TILE, F) VMEM block pads its
    # last dim to a multiple of 128 lanes; the (TILE, 1) output pads to a full
    # 128-lane row. Both are double-buffered by the pipeline.
    x_row_bytes = _round_up(f, 128) * x_itemsize
    out_row_bytes = 128 * out_itemsize
    # Grid-resident (F, 1) weight column (counted double-buffered to be safe).
    w_bytes = 2 * _round_up(f, 8) * 128 * x_itemsize
    headroom = 4 * 1024 * 1024

    budget = max(1 * 1024 * 1024, vmem_limit - w_bytes - headroom)
    rows = budget // (2 * (x_row_bytes + out_row_bytes))
    tile = max(8, min(int(rows), _round_up(n, 8)) // 8 * 8)
    if tile_n is not None:
        tile = max(8, min(tile, int(tile_n)) // 8 * 8)
    # NOTE: for extremely large F even TILE=8 may not fit; that regime needs
    # an extra "arbitrary" grid axis over F with an f32 accumulator (and a
    # non-resident weight). Not needed at these shapes.

    # (F, 1) weight column: no in-kernel transpose / per-step relayout.
    w_col = weight.reshape(f, 1).astype(dt)
    # Bias as a (1, 1) SMEM scalar (no VMEM tile / broadcast vreg).
    b_smem = bias.reshape(1, 1).astype(jnp.float32)

    grid = (pl.cdiv(n, tile),)

    cost = pl.CostEstimate(
        flops=2 * n * f,
        transcendentals=n,
        bytes_accessed=n * f * x_itemsize          # x read
        + f * x_itemsize                           # weight read
        + 4                                        # bias read
        + n * out_itemsize,                        # output write
    )

    return pl.pallas_call(
        _logreg_kernel,
        out_shape=jax.ShapeDtypeStruct((n, 1), dt),
        grid=grid,
        in_specs=[
            pl.BlockSpec((tile, f), lambda i: (i, 0)),          # x: streamed tiles
            pl.BlockSpec((f, 1), lambda i: (0, 0)),             # weight: VMEM-resident
            pl.BlockSpec(memory_space=pltpu.MemorySpace.SMEM),  # bias: SMEM scalar
        ],
        out_specs=pl.BlockSpec((tile, 1), lambda i: (i, 0)),
        compiler_params=pltpu.CompilerParams(
            dimension_semantics=("parallel",),
            vmem_limit_bytes=int(vmem_limit),
        ),
        cost_estimate=cost,
    )(x, w_col, b_smem)


if __name__ == "__main__":
    key = jax.random.PRNGKey(0)
    k_x, k_w, k_b, k_x2, k_x3 = jax.random.split(key, 5)

    N, F = 8, 32  # batch=8, n_input_features=32

    x = jax.random.normal(k_x, (N, F), dtype=jnp.float32)
    # Deterministic params mimicking nn.Linear's uniform(-1/sqrt(F), 1/sqrt(F)).
    bound = 1.0 / (F ** 0.5)
    weight = jax.random.uniform(k_w, (1, F), minval=-bound, maxval=bound,
                                dtype=jnp.float32)
    bias = jax.random.uniform(k_b, (1,), minval=-bound, maxval=bound,
                              dtype=jnp.float32)

    def ref(xv):
        return 1.0 / (1.0 + jnp.exp(-(xv @ weight.T + bias)))

    y = jax.block_until_ready(logistic_regression_forward(x, weight, bias))
    assert y.shape == (N, 1)
    assert jnp.allclose(y, ref(x), atol=1e-5, rtol=1e-5)

    # Ragged batch: exercises the clipped / masked partial final block
    # (no jnp.pad copy of x anymore).
    N2 = 5
    x2 = jax.random.normal(k_x2, (N2, F), dtype=jnp.float32)
    y2 = jax.block_until_ready(logistic_regression_forward(x2, weight, bias))
    assert y2.shape == (N2, 1)
    assert jnp.allclose(y2, ref(x2), atol=1e-5, rtol=1e-5)

    # Multi-step grid with a partial last tile (explicit small tile cap).
    N3 = 300
    x3 = jax.random.normal(k_x3, (N3, F), dtype=jnp.float32)
    y3 = jax.block_until_ready(
        logistic_regression_forward(x3, weight, bias, tile_n=128))
    assert y3.shape == (N3, 1)
    assert jnp.allclose(y3, ref(x3), atol=1e-5, rtol=1e-5)

    print("KERNEL_OK")
</pallas_src>

<mosaic_0001>
module attributes {stable_mosaic.version = 11 : i64} {
  func.func @_logreg_kernel(%arg0: i32, %arg1: memref<8x32xf32, #tpu.memory_space<vmem>>, %arg2: memref<32x1xf32, #tpu.memory_space<vmem>>, %arg3: memref<1x1xf32, #tpu.memory_space<smem>>, %arg4: memref<8x1xf32, #tpu.memory_space<vmem>>) attributes {dimension_semantics = [#tpu.dimension_semantics<parallel>], iteration_bounds = array<i64: 1>, scalar_prefetch = 0 : i64, scratch_operands = 0 : i64, tpu.core_type = #tpu.core_type<tc>, window_params = [{transform_indices = @transform_0, window_bounds = array<i64: 8, 32>}, {pipeline_mode = #tpu.pipeline_mode<synchronous>, transform_indices = @transform_1, window_bounds = array<i64: 32, 1>}, {transform_indices = @transform_2, window_bounds = array<i64: 1, 1>}, {transform_indices = @transform_3, window_bounds = array<i64: 8, 1>}]} {
    %c0 = arith.constant 0 : index
    %c0_0 = arith.constant 0 : index
    %0 = vector.load %arg1[%c0, %c0_0] : memref<8x32xf32, #tpu.memory_space<vmem>>, vector<8x32xf32>
    %c0_1 = arith.constant 0 : index
    %c0_2 = arith.constant 0 : index
    %1 = vector.load %arg2[%c0_1, %c0_2] : memref<32x1xf32, #tpu.memory_space<vmem>>, vector<32x1xf32>
    %cst = arith.constant dense<0.000000e+00> : vector<8x1xf32>
    %2 = tpu.matmul %0, %1, %cst {dimension_numbers = #tpu.dot_dimension_numbers<[1], [0], [0], [1], [0, 0, 1, 1], [], []>} : vector<8x32xf32>, vector<32x1xf32>, vector<8x1xf32> -> vector<8x1xf32>
    %c0_3 = arith.constant 0 : index
    %c0_4 = arith.constant 0 : index
    %3 = memref.load %arg3[%c0_3, %c0_4] : memref<1x1xf32, #tpu.memory_space<smem>>
    %4 = vector.broadcast %3 : f32 to vector<8x1xf32>
    %5 = arith.addf %2, %4 : vector<8x1xf32>
    %cst_5 = arith.constant 0.000000e+00 : f32
    %6 = vector.broadcast %cst_5 : f32 to vector<8x1xf32>
    %7 = arith.subf %6, %5 : vector<8x1xf32>
    %8 = math.exp %7 : vector<8x1xf32>
    %cst_6 = arith.constant 1.000000e+00 : f32
    %9 = vector.broadcast %cst_6 : f32 to vector<8x1xf32>
    %10 = arith.addf %9, %8 : vector<8x1xf32>
    %cst_7 = arith.constant 1.000000e+00 : f32
    %11 = vector.broadcast %cst_7 : f32 to vector<8x1xf32>
    %12 = arith.divf %11, %10 : vector<8x1xf32>
    %c0_8 = arith.constant 0 : index
    %c0_9 = arith.constant 0 : index
    %13 = vector.load %arg4[%c0_8, %c0_9] : memref<8x1xf32, #tpu.memory_space<vmem>>, vector<8x1xf32>
    tpu.vector_store %arg4[%c0_8, %c0_9], %12 {strides = array<i32>} : memref<8x1xf32, #tpu.memory_space<vmem>>, vector<8x1xf32>,
    return
  }
  func.func @transform_0(%arg0: i32) -> (i32, i32) {
    %c0_i32 = arith.constant 0 : i32
    %c0_i32_0 = arith.constant 0 : i32
    return %arg0, %c0_i32 : i32, i32
  }
  func.func @transform_1(%arg0: i32) -> (i32, i32) {
    %c0_i32 = arith.constant 0 : i32
    %c0_i32_0 = arith.constant 0 : i32
    %c0_i32_1 = arith.constant 0 : i32
    return %c0_i32, %c0_i32_0 : i32, i32
  }
  func.func @transform_2(%arg0: i32) -> (i32, i32) {
    %c0_i32 = arith.constant 0 : i32
    %c0_i32_0 = arith.constant 0 : i32
    %c0_i32_1 = arith.constant 0 : i32
    return %c0_i32, %c0_i32_0 : i32, i32
  }
  func.func @transform_3(%arg0: i32) -> (i32, i32) {
    %c0_i32 = arith.constant 0 : i32
    %c0_i32_0 = arith.constant 0 : i32
    return %arg0, %c0_i32 : i32, i32
  }
}

</mosaic_0001>

<llo_original>
// kernel: tpu_custom_call.1
$region0: #{tpu_custom_call.1}
  #allocation0 [shape = 'u32[]', space=smem, size = 0x4, offset = 0x4, fixed_abs, tag = 'smem constant byte address 0x4 - core index']
  #allocation1 [shape = 'u32[144,128]{1,0:T(1,128)}', space=vmem, size = 0x12000, scoped, tag = 'internal scratch']
  #allocation2 [shape = 'f32[1,1]{1,0:T(1,128)S(6)}', space=smem, size = 0x200, scoped, tag = 'scoped memory for tpu_custom_call.1']
  %s0 = inlined_call_operand.vmem [shape: f32[8,32], index: 0, kind: input, shape index: {}]
  %s1 = inlined_call_operand.vmem [shape: f32[32,1], index: 1, kind: input, shape index: {}]
  %s2 = inlined_call_operand.<no memory space> [shape: f32[1,1], index: 2, kind: input, shape index: {}]
  %s3 = inlined_call_operand.vmem [shape: f32[8,1], index: 3, kind: output, shape index: {}]
  %s4 = sld [smem:[#allocation0]]
  $region22: #{tpu_custom_call.1} parent=0
    _
  %s6 = ssub.s32 1, %s4
  %s7 = scalar_select 0, %s6, %s4
  %8 = sst [smem:[#allocation2]] %s2
  // Predicated region
  $region2: #{tpu_custom_call.1} parent=0 // pred_check
    _
  $region3: #{tpu_custom_call.1} parent=0 // pred_check_branch
    %10 = sbr.rel (0) target = $region5
  $region4: #{tpu_custom_call.1} parent=0 // pred_region
    _
  $region5: #{tpu_custom_call.1} parent=0 // pred_fallthru
    _
  // Predicated region
  $region6: #{tpu_custom_call.1} parent=0 // pred_check
    _
  $region7: #{tpu_custom_call.1} parent=0 // pred_check_branch
    %12 = sbr.rel (0) target = $region9
  $region8: #{tpu_custom_call.1} parent=0 // pred_region
    _
  $region9: #{tpu_custom_call.1} parent=0 // pred_fallthru
    _
  // Predicated region
  $region10: #{tpu_custom_call.1} parent=0 // pred_check
    _
  $region11: #{tpu_custom_call.1} parent=0 // pred_check_branch
    %14 = sbr.rel (0) target = $region13
  $region12: #{tpu_custom_call.1} parent=0 // pred_region
    _
  $region13: #{tpu_custom_call.1} parent=0 // pred_fallthru
    _
  %v15 = vld [vmem:[%s0] sm:$0xff]
  %v16 = vld [vmem:[%s1] sm:$0xff]
  %v17 = vld [vmem:[%s1 + $0x8] sm:$0xff]
  %v18 = vld [vmem:[%s1 + $0x10] sm:$0xff]
  %v19 = vld [vmem:[%s1 + $0x18] sm:$0xff]
  %s20 = sld [smem:[#allocation2]]
  %v21 = vstv %s20
  %vm22 = vcmask 261120
  %v24 = vsel %vm22, %v15, 0
  %26 = vmatprep.subr.mxu0 0.0
  %27 = vmatpush1.msra.mxu0 %v16
  %28 = vmatprep.subr.mxu0 0.0
  %29 = vmatpush1.msra.mxu0 %v17
  %30 = vmatprep.subr.mxu0 0.0
  %31 = vmatpush1.msra.mxu0 %v18
  %32 = vmatprep.subr.mxu0 0.0
  %33 = vmatpush1.msra.mxu0 %v19
  %34 = vmatprep.subr.mxu0 0.0
  %35 = vmatpush1.msra.mxu0 0.0
  %36 = vmatprep.subr.mxu0 0.0
  %37 = vmatpush1.msra.mxu0 0.0
  %38 = vmatprep.subr.mxu0 0.0
  %39 = vmatpush1.msra.mxu0 0.0
  %40 = vmatprep.subr.mxu0 0.0
  %41 = vmatpush1.msra.mxu0 0.0
  %42 = vmatprep.subr.mxu0 0.0
  %43 = vmatpush1.msra.mxu0 0.0
  %44 = vmatprep.subr.mxu0 0.0
  %45 = vmatpush1.msra.mxu0 0.0
  %46 = vmatprep.subr.mxu0 0.0
  %47 = vmatpush1.msra.mxu0 0.0
  %48 = vmatprep.subr.mxu0 0.0
  %49 = vmatpush1.msra.mxu0 0.0
  %50 = vmatprep.subr.mxu0 0.0
  %51 = vmatpush1.msra.mxu0 0.0
  %52 = vmatprep.subr.mxu0 0.0
  %53 = vmatpush1.msra.mxu0 0.0
  %54 = vmatprep.subr.mxu0 0.0
  %55 = vmatpush1.msra.mxu0 0.0
  %56 = vmatprep.subr.mxu0 0.0
  %57 = vmatpush1.msra.mxu0 0.0
  %58 = vmatprep.subr.mxu0 0.0
  %59 = vmatpush1.msra.mxu0 0.0
  %60 = vmatprep.subr.mxu0 0.0
  %61 = vmatpush1.msra.mxu0 0.0
  %62 = vmatprep.subr.mxu0 0.0
  %63 = vmatpush1.msra.mxu0 0.0
  %64 = vmatprep.subr.mxu0 0.0
  %65 = vmatpush1.msra.mxu0 0.0
  %66 = vmatprep.subr.mxu0 0.0
  %67 = vmatpush1.msra.mxu0 0.0
  %68 = vmatprep.subr.mxu0 0.0
  %69 = vmatpush1.msra.mxu0 0.0
  %70 = vmatprep.subr.mxu0 0.0
  %71 = vmatpush1.msra.mxu0 0.0
  %72 = vmatprep.subr.mxu0 0.0
  %73 = vmatpush1.msra.mxu0 0.0
  %74 = vmatprep.subr.mxu0 0.0
  %75 = vmatpush1.msra.mxu0 0.0
  %76 = vmatprep.subr.mxu0 0.0
  %77 = vmatpush1.msra.mxu0 0.0
  %78 = vmatprep.subr.mxu0 0.0
  %79 = vmatpush1.msra.mxu0 0.0
  %80 = vmatprep.subr.mxu0 0.0
  %81 = vmatpush1.msra.mxu0 0.0
  %82 = vmatprep.subr.mxu0 0.0
  %83 = vmatpush1.msra.mxu0 0.0
  %84 = vmatprep.subr.mxu0 0.0
  %85 = vmatpush1.msra.mxu0 0.0
  %86 = vmatprep.subr.mxu0 0.0
  %87 = vmatpush1.msra.mxu0 0.0
  %88 = vmatprep.subr.mxu0 0.0
  %89 = vmatpush1.msra.mxu0 0.0
  %90 = vmatprep.mubr.f32.mxu0 0.0
  %91 = vmatmul.mubr.f32.gmra.mrb[0].mxu0 %v24
  %v92 = vpop.f32.mrb[0].mxu0
  %v93 = vadd.f32 %v21, %v92
  %v94 = vpop.f32.mrb[0].mxu0
  %95 = vdwg.mxu0
  %v96 = vsub.f32 0.0, %v93
  %v97 = vmul.f32 %v96, 1.442695
  %v98 = vpow.pop %v97
  %v99 = vadd.f32 %v98, 1.0
  %v100 = vrcp.pop %v99
  %v101 = vmul.f32 1.0, %v100
  %vm102 = vcmask 7168
  %103 = vst.msk [vmem:[%s3] sm:$0xff] %vm102, %v101
  // Predicated region
  $region14: #{tpu_custom_call.1} parent=0 // pred_check
    _
  $region15: #{tpu_custom_call.1} parent=0 // pred_check_branch
    %105 = sbr.rel (0) target = $region17
  $region16: #{tpu_custom_call.1} parent=0 // pred_region
    _
  $region17: #{tpu_custom_call.1} parent=0 // pred_fallthru
    _
  // Predicated region
  $region18: #{tpu_custom_call.1} parent=0 // pred_check
    _
  $region19: #{tpu_custom_call.1} parent=0 // pred_check_branch
    %107 = sbr.rel (0) target = $region21
  $region20: #{tpu_custom_call.1} parent=0 // pred_region
    _
  $region21: #{tpu_custom_call.1} parent=0 // pred_fallthru
    _

</llo_original>
